<compile_context>
chip_gen: v5e
topology: v5e:2x2
jax: 0.10.0
libtpu: 0.0.40
codegen_flags: <defaults>
</compile_context>

<pallas_src>
import jax
import jax.numpy as jnp
from jax import lax
from jax.experimental import pallas as pl
from jax.experimental.pallas import tpu as pltpu

N_SPECIES = 119   # species-table length in the torch module
TAB_PAD = 128     # padded table length (multiple of the unroll factor)
SUBLANES = 8      # sublane rows per node block
MAX_LANES = 1024  # max lanes per node block -> up to 8192 nodes per grid step
UNROLL = 8        # species handled per inner fori_loop iteration


def _rescale_kernel(scales_ref, shifts_ref, z_ref, x_ref, out_ref):
    """One (SUBLANES, LANES) node block: gather scales[Z] / shifts[Z] with a VPU
    select sweep over the SMEM species tables, then a fused FMA per value row."""
    z = z_ref[...]                                    # (8, L) int32
    zero = jnp.zeros(z.shape, jnp.float32)

    def body(j, carry):
        acc_s, acc_h = carry
        base = j * UNROLL
        for t in range(UNROLL):                       # hand-unrolled inner chunk
            k = base + t
            m = z == k
            acc_s = jnp.where(m, scales_ref[k], acc_s)
            acc_h = jnp.where(m, shifts_ref[k], acc_h)
        return acc_s, acc_h

    # Every valid Z in [0, TAB_PAD) is visited, so the zero init never leaks
    # into in-range species.  Out-of-range Z (>= TAB_PAD) silently produces 0
    # (the torch module would raise on an out-of-range gather instead).
    acc_s, acc_h = lax.fori_loop(0, TAB_PAD // UNROLL, body, (zero, zero))

    for r in range(x_ref.shape[0]):                   # static number of fused key rows
        out_ref[r] = x_ref[r] * acc_s + acc_h


def _cdiv(a, b):
    return -(-a // b)


def _block_geometry(n):
    """Largest lanes-per-block in {1024,512,256,128} that still leaves >= 2 grid
    steps (megacore), falling back to 128 lanes for tiny inputs."""
    for lanes in (MAX_LANES, 512, 256, 128):
        if n >= 2 * SUBLANES * lanes:
            break
    else:
        lanes = 128
    n_blocks = max(1, _cdiv(n, SUBLANES * lanes))
    return lanes, n_blocks


def _pad_table(table, fill):
    t = jnp.asarray(table, jnp.float32).reshape(-1)
    assert t.shape[0] <= TAB_PAD
    return jnp.pad(t, (0, TAB_PAD - t.shape[0]), constant_values=fill)


def apply_per_species(values, Z, scales_tab, shifts_tab):
    """values: (K, N) stacked per-node rows; Z: (N,) atomic numbers;
    scales_tab / shifts_tab: (TAB_PAD,) padded species tables.
    Returns (K, N) float32: values * scales_tab[Z] + shifts_tab[Z]."""
    K, N = values.shape
    lanes, n_blocks = _block_geometry(N)
    rows = n_blocks * SUBLANES
    n_pad = rows * lanes

    x = values.astype(jnp.float32)
    z = Z.astype(jnp.int32)
    if n_pad != N:
        x = jnp.pad(x, ((0, 0), (0, n_pad - N)))
        z = jnp.pad(z, (0, n_pad - N))    # padded nodes -> species 0, sliced off below
    x = x.reshape(K, rows, lanes)
    z = z.reshape(rows, lanes)

    out = pl.pallas_call(
        _rescale_kernel,
        grid=(n_blocks,),
        in_specs=[
            pl.BlockSpec(memory_space=pltpu.MemorySpace.SMEM),        # scales table
            pl.BlockSpec(memory_space=pltpu.MemorySpace.SMEM),        # shifts table
            pl.BlockSpec((SUBLANES, lanes), lambda i: (i, 0)),        # Z block
            pl.BlockSpec((K, SUBLANES, lanes), lambda i: (0, i, 0)),  # value block
        ],
        out_specs=pl.BlockSpec((K, SUBLANES, lanes), lambda i: (0, i, 0)),
        out_shape=jax.ShapeDtypeStruct((K, rows, lanes), jnp.float32),
        compiler_params=pltpu.CompilerParams(
            dimension_semantics=("parallel",)),                       # node blocks independent
    )(scales_tab, shifts_tab, z, x)
    return out.reshape(K, n_pad)[:, :N]


def per_species_rescale_shift(data, scales=None, shifts=None,
                              scales_keys=("atomic_energy",),
                              shifts_keys=("atomic_energy",)):
    """Functional equivalent of PerSpeciesRescaleShift.forward (eval mode).

    scales / shifts: (119,) arrays or None.  Per-node values may be (N,) or
    (N, 1); they are flattened per node and restored to shape/dtype."""
    has_scales = scales is not None
    has_shifts = shifts is not None
    out = dict(data)
    if not (has_scales or has_shifts):
        return out

    Z = jnp.asarray(data["Z"], jnp.int32)
    scales_tab = _pad_table(scales if has_scales else jnp.ones((N_SPECIES,)), 1.0)
    shifts_tab = _pad_table(shifts if has_shifts else jnp.zeros((N_SPECIES,)), 0.0)
    ones_tab = _pad_table(jnp.ones((N_SPECIES,)), 1.0)
    zeros_tab = _pad_table(jnp.zeros((N_SPECIES,)), 0.0)

    # Keys touched by the module, grouped by which effective tables they use;
    # each group is one fused pallas_call with stacked value rows.
    keys = []
    if has_scales:
        keys += [k for k in scales_keys if k not in keys]
    if has_shifts:
        keys += [k for k in shifts_keys if k not in keys]
    groups = {}
    for key in keys:
        use_s = has_scales and key in scales_keys
        use_h = has_shifts and key in shifts_keys
        groups.setdefault((use_s, use_h), []).append(key)

    for (use_s, use_h), gkeys in groups.items():
        s_tab = scales_tab if use_s else ones_tab
        h_tab = shifts_tab if use_h else zeros_tab
        orig = [jnp.asarray(out[k]) for k in gkeys]
        vals = jnp.stack([v.reshape(-1).astype(jnp.float32) for v in orig])   # (K, N)
        res = apply_per_species(vals, Z, s_tab, h_tab)
        for i, k in enumerate(gkeys):
            out[k] = res[i].reshape(orig[i].shape).astype(orig[i].dtype)

    # TODO(synk): __init__/datamodule construction of the tables from str/int
    # dicts (atomic_numbers lookup) and trainable-parameter registration are
    # host-side setup, not kernel work.
    return out


if __name__ == "__main__":
    key = jax.random.PRNGKey(0)
    k1, k2, k3, k4 = jax.random.split(key, 4)

    # deterministic species tables (shape (119,), as in the module buffers)
    scales = jnp.ones((119,), jnp.float32).at[1].set(0.9).at[6].set(1.3).at[8].set(1.1)
    shifts = jnp.zeros((119,), jnp.float32).at[1].set(-13.6).at[6].set(-1029.0).at[8].set(-2042.0)

    # --- small system: N = 8 nodes, value stored as (N, 1), single grid step ---
    N = 8
    Z = jax.random.randint(k1, (N,), 1, 9, dtype=jnp.int32)
    atomic_energy = jax.random.normal(k2, (N, 1), jnp.float32)
    data = {"Z": Z, "atomic_energy": atomic_energy}

    out = per_species_rescale_shift(data, scales, shifts)
    jax.block_until_ready(out["atomic_energy"])
    ref = atomic_energy * scales[Z][:, None] + shifts[Z][:, None]
    assert out["atomic_energy"].shape == atomic_energy.shape
    assert jnp.allclose(out["atomic_energy"], ref, atol=1e-5, rtol=1e-5)

    # --- larger system: N = 2500 nodes (3 node blocks, full species range) ---
    N2 = 2500
    Z2 = jax.random.randint(k3, (N2,), 1, 119, dtype=jnp.int32)
    ae2 = jax.random.normal(k4, (N2,), jnp.float32)
    out2 = per_species_rescale_shift({"Z": Z2, "atomic_energy": ae2}, scales, shifts)
    jax.block_until_ready(out2["atomic_energy"])
    ref2 = ae2 * scales[Z2] + shifts[Z2]
    assert jnp.allclose(out2["atomic_energy"], ref2, atol=1e-5, rtol=1e-5)

    print("KERNEL_OK")
</pallas_src>

<mosaic_0001>
module attributes {stable_mosaic.version = 11 : i64} {
  func.func @_rescale_kernel(%arg0: i32, %arg1: memref<128xf32, #tpu.memory_space<smem>>, %arg2: memref<128xf32, #tpu.memory_space<smem>>, %arg3: memref<8x128xi32, #tpu.memory_space<vmem>>, %arg4: memref<1x8x128xf32, #tpu.memory_space<vmem>>, %arg5: memref<1x8x128xf32, #tpu.memory_space<vmem>>) attributes {dimension_semantics = [#tpu.dimension_semantics<parallel>], iteration_bounds = array<i64: 1>, scalar_prefetch = 0 : i64, scratch_operands = 0 : i64, tpu.core_type = #tpu.core_type<tc>, window_params = [{transform_indices = @transform_0, window_bounds = array<i64: 128>}, {transform_indices = @transform_1, window_bounds = array<i64: 128>}, {transform_indices = @transform_2, window_bounds = array<i64: 8, 128>}, {transform_indices = @transform_3, window_bounds = array<i64: 1, 8, 128>}, {transform_indices = @transform_4, window_bounds = array<i64: 1, 8, 128>}]} {
    %c0 = arith.constant 0 : index
    %c0_0 = arith.constant 0 : index
    %0 = vector.load %arg3[%c0, %c0_0] : memref<8x128xi32, #tpu.memory_space<vmem>>, vector<8x128xi32>
    %cst = arith.constant 0.000000e+00 : f32
    %1 = vector.broadcast %cst : f32 to vector<8x128xf32>
    %c0_i32 = arith.constant 0 : i32
    %c16_i32 = arith.constant 16 : i32
    %2 = arith.addi %c0_i32, %c16_i32 : i32
    %c1_i32 = arith.constant 1 : i32
    %3:2 = scf.for %arg6 = %c0_i32 to %2 step %c1_i32 iter_args(%arg7 = %1, %arg8 = %1) -> (vector<8x128xf32>, vector<8x128xf32>)  : i32 {
      %c8_i32 = arith.constant 8 : i32
      %11 = arith.muli %arg6, %c8_i32 : i32
      %c0_i32_8 = arith.constant 0 : i32
      %12 = arith.addi %11, %c0_i32_8 : i32
      %13 = vector.broadcast %12 : i32 to vector<8x128xi32>
      %14 = arith.cmpi eq, %0, %13 : vector<8x128xi32>
      %15 = arith.index_cast %12 : i32 to index
      %16 = memref.load %arg1[%15] : memref<128xf32, #tpu.memory_space<smem>>
      %17 = vector.broadcast %16 : f32 to vector<8x128xf32>
      %18 = arith.select %14, %17, %arg7 : vector<8x128xi1>, vector<8x128xf32>
      %19 = arith.index_cast %12 : i32 to index
      %20 = memref.load %arg2[%19] : memref<128xf32, #tpu.memory_space<smem>>
      %21 = vector.broadcast %20 : f32 to vector<8x128xf32>
      %22 = arith.select %14, %21, %arg8 : vector<8x128xi1>, vector<8x128xf32>
      %c1_i32_9 = arith.constant 1 : i32
      %23 = arith.addi %11, %c1_i32_9 : i32
      %24 = vector.broadcast %23 : i32 to vector<8x128xi32>
      %25 = arith.cmpi eq, %0, %24 : vector<8x128xi32>
      %26 = arith.index_cast %23 : i32 to index
      %27 = memref.load %arg1[%26] : memref<128xf32, #tpu.memory_space<smem>>
      %28 = vector.broadcast %27 : f32 to vector<8x128xf32>
      %29 = arith.select %25, %28, %18 : vector<8x128xi1>, vector<8x128xf32>
      %30 = arith.index_cast %23 : i32 to index
      %31 = memref.load %arg2[%30] : memref<128xf32, #tpu.memory_space<smem>>
      %32 = vector.broadcast %31 : f32 to vector<8x128xf32>
      %33 = arith.select %25, %32, %22 : vector<8x128xi1>, vector<8x128xf32>
      %c2_i32 = arith.constant 2 : i32
      %34 = arith.addi %11, %c2_i32 : i32
      %35 = vector.broadcast %34 : i32 to vector<8x128xi32>
      %36 = arith.cmpi eq, %0, %35 : vector<8x128xi32>
      %37 = arith.index_cast %34 : i32 to index
      %38 = memref.load %arg1[%37] : memref<128xf32, #tpu.memory_space<smem>>
      %39 = vector.broadcast %38 : f32 to vector<8x128xf32>
      %40 = arith.select %36, %39, %29 : vector<8x128xi1>, vector<8x128xf32>
      %41 = arith.index_cast %34 : i32 to index
      %42 = memref.load %arg2[%41] : memref<128xf32, #tpu.memory_space<smem>>
      %43 = vector.broadcast %42 : f32 to vector<8x128xf32>
      %44 = arith.select %36, %43, %33 : vector<8x128xi1>, vector<8x128xf32>
      %c3_i32 = arith.constant 3 : i32
      %45 = arith.addi %11, %c3_i32 : i32
      %46 = vector.broadcast %45 : i32 to vector<8x128xi32>
      %47 = arith.cmpi eq, %0, %46 : vector<8x128xi32>
      %48 = arith.index_cast %45 : i32 to index
      %49 = memref.load %arg1[%48] : memref<128xf32, #tpu.memory_space<smem>>
      %50 = vector.broadcast %49 : f32 to vector<8x128xf32>
      %51 = arith.select %47, %50, %40 : vector<8x128xi1>, vector<8x128xf32>
      %52 = arith.index_cast %45 : i32 to index
      %53 = memref.load %arg2[%52] : memref<128xf32, #tpu.memory_space<smem>>
      %54 = vector.broadcast %53 : f32 to vector<8x128xf32>
      %55 = arith.select %47, %54, %44 : vector<8x128xi1>, vector<8x128xf32>
      %c4_i32 = arith.constant 4 : i32
      %56 = arith.addi %11, %c4_i32 : i32
      %57 = vector.broadcast %56 : i32 to vector<8x128xi32>
      %58 = arith.cmpi eq, %0, %57 : vector<8x128xi32>
      %59 = arith.index_cast %56 : i32 to index
      %60 = memref.load %arg1[%59] : memref<128xf32, #tpu.memory_space<smem>>
      %61 = vector.broadcast %60 : f32 to vector<8x128xf32>
      %62 = arith.select %58, %61, %51 : vector<8x128xi1>, vector<8x128xf32>
      %63 = arith.index_cast %56 : i32 to index
      %64 = memref.load %arg2[%63] : memref<128xf32, #tpu.memory_space<smem>>
      %65 = vector.broadcast %64 : f32 to vector<8x128xf32>
      %66 = arith.select %58, %65, %55 : vector<8x128xi1>, vector<8x128xf32>
      %c5_i32 = arith.constant 5 : i32
      %67 = arith.addi %11, %c5_i32 : i32
      %68 = vector.broadcast %67 : i32 to vector<8x128xi32>
      %69 = arith.cmpi eq, %0, %68 : vector<8x128xi32>
      %70 = arith.index_cast %67 : i32 to index
      %71 = memref.load %arg1[%70] : memref<128xf32, #tpu.memory_space<smem>>
      %72 = vector.broadcast %71 : f32 to vector<8x128xf32>
      %73 = arith.select %69, %72, %62 : vector<8x128xi1>, vector<8x128xf32>
      %74 = arith.index_cast %67 : i32 to index
      %75 = memref.load %arg2[%74] : memref<128xf32, #tpu.memory_space<smem>>
      %76 = vector.broadcast %75 : f32 to vector<8x128xf32>
      %77 = arith.select %69, %76, %66 : vector<8x128xi1>, vector<8x128xf32>
      %c6_i32 = arith.constant 6 : i32
      %78 = arith.addi %11, %c6_i32 : i32
      %79 = vector.broadcast %78 : i32 to vector<8x128xi32>
      %80 = arith.cmpi eq, %0, %79 : vector<8x128xi32>
      %81 = arith.index_cast %78 : i32 to index
      %82 = memref.load %arg1[%81] : memref<128xf32, #tpu.memory_space<smem>>
      %83 = vector.broadcast %82 : f32 to vector<8x128xf32>
      %84 = arith.select %80, %83, %73 : vector<8x128xi1>, vector<8x128xf32>
      %85 = arith.index_cast %78 : i32 to index
      %86 = memref.load %arg2[%85] : memref<128xf32, #tpu.memory_space<smem>>
      %87 = vector.broadcast %86 : f32 to vector<8x128xf32>
      %88 = arith.select %80, %87, %77 : vector<8x128xi1>, vector<8x128xf32>
      %c7_i32 = arith.constant 7 : i32
      %89 = arith.addi %11, %c7_i32 : i32
      %90 = vector.broadcast %89 : i32 to vector<8x128xi32>
      %91 = arith.cmpi eq, %0, %90 : vector<8x128xi32>
      %92 = arith.index_cast %89 : i32 to index
      %93 = memref.load %arg1[%92] : memref<128xf32, #tpu.memory_space<smem>>
      %94 = vector.broadcast %93 : f32 to vector<8x128xf32>
      %95 = arith.select %91, %94, %84 : vector<8x128xi1>, vector<8x128xf32>
      %96 = arith.index_cast %89 : i32 to index
      %97 = memref.load %arg2[%96] : memref<128xf32, #tpu.memory_space<smem>>
      %98 = vector.broadcast %97 : f32 to vector<8x128xf32>
      %99 = arith.select %91, %98, %88 : vector<8x128xi1>, vector<8x128xf32>
      scf.yield %95, %99 : vector<8x128xf32>, vector<8x128xf32>
    }
    %c16_i32_1 = arith.constant 16 : i32
    %c0_2 = arith.constant 0 : index
    %c0_3 = arith.constant 0 : index
    %c0_4 = arith.constant 0 : index
    %4 = vector.load %arg4[%c0_2, %c0_3, %c0_4] : memref<1x8x128xf32, #tpu.memory_space<vmem>>, vector<1x8x128xf32>
    %5 = vector.shape_cast %4 : vector<1x8x128xf32> to vector<8x128xf32>
    %6 = arith.mulf %5, %3#0 : vector<8x128xf32>
    %7 = arith.addf %6, %3#1 : vector<8x128xf32>
    %c0_5 = arith.constant 0 : index
    %c0_6 = arith.constant 0 : index
    %c0_7 = arith.constant 0 : index
    %8 = vector.load %arg5[%c0_5, %c0_6, %c0_7] : memref<1x8x128xf32, #tpu.memory_space<vmem>>, vector<1x8x128xf32>
    %9 = vector.shape_cast %8 : vector<1x8x128xf32> to vector<8x128xf32>
    %10 = vector.shape_cast %7 : vector<8x128xf32> to vector<1x8x128xf32>
    tpu.vector_store %arg5[%c0_5, %c0_6, %c0_7], %10 {strides = array<i32>} : memref<1x8x128xf32, #tpu.memory_space<vmem>>, vector<1x8x128xf32>,
    return
  }
  func.func @transform_0(%arg0: i32) -> i32 {
    %c0_i32 = arith.constant 0 : i32
    %c0_i32_0 = arith.constant 0 : i32
    return %c0_i32 : i32
  }
  func.func @transform_1(%arg0: i32) -> i32 {
    %c0_i32 = arith.constant 0 : i32
    %c0_i32_0 = arith.constant 0 : i32
    return %c0_i32 : i32
  }
  func.func @transform_2(%arg0: i32) -> (i32, i32) {
    %c0_i32 = arith.constant 0 : i32
    %c0_i32_0 = arith.constant 0 : i32
    return %arg0, %c0_i32 : i32, i32
  }
  func.func @transform_3(%arg0: i32) -> (i32, i32, i32) {
    %c0_i32 = arith.constant 0 : i32
    %c0_i32_0 = arith.constant 0 : i32
    %c0_i32_1 = arith.constant 0 : i32
    return %c0_i32, %arg0, %c0_i32_0 : i32, i32, i32
  }
  func.func @transform_4(%arg0: i32) -> (i32, i32, i32) {
    %c0_i32 = arith.constant 0 : i32
    %c0_i32_0 = arith.constant 0 : i32
    %c0_i32_1 = arith.constant 0 : i32
    return %c0_i32, %arg0, %c0_i32_0 : i32, i32, i32
  }
}

</mosaic_0001>

<llo_original>
// kernel: tpu_custom_call.1
$region0: #{tpu_custom_call.1}
  #allocation0 [shape = 'u32[]', space=smem, size = 0x4, offset = 0x4, fixed_abs, tag = 'smem constant byte address 0x4 - core index']
  #allocation1 [shape = 'u32[72,128]{1,0:T(1,128)}', space=vmem, size = 0x9000, scoped, tag = 'internal scratch']
  %s0 = inlined_call_operand.hbm [shape: f32[128], index: 0, kind: input, shape index: {}]
  %s1 = inlined_call_operand.hbm [shape: f32[128], index: 1, kind: input, shape index: {}]
  %s2 = inlined_call_operand.hbm [shape: s32[8,128], index: 2, kind: input, shape index: {}]
  %s3 = inlined_call_operand.hbm [shape: f32[1,8,128], index: 3, kind: input, shape index: {}]
  %s4 = inlined_call_operand.hbm [shape: f32[1,8,128], index: 4, kind: output, shape index: {}]
  %s5 = sld [smem:[#allocation0]]
  $region49: #{tpu_custom_call.1} parent=0
    _
  %s7 = ssub.s32 1, %s5
  %s8 = scalar_select 0, %s7, %s5
  $region1: #{tpu_custom_call.1} parent=0
    #allocation2 [shape = 'u8[512]{0}', space=smem, size = 0x200, scoped, tag = 'input window, operand 0, single buffered']
    #allocation3 [shape = 's32[1]{0}', space=sflag, size = 0x4, scoped, tag = 'scoped memory for tpu_custom_call.1']
    #allocation4 [shape = 's32[1]{0}', space=sflag, size = 0x4, scoped, tag = 'scoped memory for tpu_custom_call.1']
    #allocation5 [shape = 's32[1]{0}', space=sflag, size = 0x4, scoped, tag = 'scoped memory for tpu_custom_call.1']
    #allocation6 [shape = 'u8[512]{0}', space=smem, size = 0x200, scoped, tag = 'input window, operand 1, single buffered']
    #allocation7 [shape = 's32[1]{0}', space=sflag, size = 0x4, scoped, tag = 'scoped memory for tpu_custom_call.1']
    #allocation8 [shape = 'u8[4096]{0}', space=vmem, size = 0x1000, scoped, tag = 'input window, operand 2, single buffered']
    #allocation9 [shape = 'u8[4096]{0}', space=vmem, size = 0x1000, scoped, tag = 'input window, operand 3, single buffered']
    #allocation10 [shape = 's32[1]{0}', space=sflag, size = 0x4, scoped, tag = 'scoped memory for tpu_custom_call.1']
    #allocation11 [shape = 'u8[4096]{0}', space=vmem, size = 0x1000, scoped, tag = 'output window, operand 0, single buffered']
    %9 = vsyncpa [#allocation5], 0
    %10 = vsyncpa [#allocation7], 0
    %11 = vsyncpa [#allocation3], 0
    %12 = vsyncpa [#allocation10], 0
    %13 = vsyncpa [#allocation4], 0
    // Predicated region
    $region2: #{tpu_custom_call.1} parent=1 // pred_check
      _
    $region3: #{tpu_custom_call.1} parent=1 // pred_check_branch
      %15 = sbr.rel (0) target = $region5
    $region4: #{tpu_custom_call.1} parent=1 // pred_region
      %17 = vsyncadd [#allocation5], 0
      %s19 = sshll.u32 %s0, 4
      %s20 = int_to_ptr.hbm [resolvable:$true] %s19
      %22 = dma.hbm_to_smem %s20, 16, [#allocation2], [#allocation5]
    $region5: #{tpu_custom_call.1} parent=1 // pred_fallthru
      _
    // Predicated region
    $region6: #{tpu_custom_call.1} parent=1 // pred_check
      _
    $region7: #{tpu_custom_call.1} parent=1 // pred_check_branch
      %24 = sbr.rel (0) target = $region9
    $region8: #{tpu_custom_call.1} parent=1 // pred_region
      %26 = vsyncadd [#allocation7], 0
      %s28 = sshll.u32 %s1, 4
      %s29 = int_to_ptr.hbm [resolvable:$true] %s28
      %31 = dma.hbm_to_smem %s29, 16, [#allocation6], [#allocation7]
    $region9: #{tpu_custom_call.1} parent=1 // pred_fallthru
      _
    // Predicated region
    $region10: #{tpu_custom_call.1} parent=1 // pred_check
      _
    $region11: #{tpu_custom_call.1} parent=1 // pred_check_branch
      %33 = sbr.rel (0) target = $region13
    $region12: #{tpu_custom_call.1} parent=1 // pred_region
      %35 = vsyncadd [#allocation3], 0
      %s37 = sshll.u32 %s2, 4
      %s38 = int_to_ptr.hbm [resolvable:$true] %s37
      %s39 = sshll.u32 [#allocation8], 4
      %s40 = int_to_ptr.vmem [resolvable:$true] %s39
      %42 = dma.hbm_to_vmem [thread:$0]  %s38, 128, %s40, [#allocation3]
    $region13: #{tpu_custom_call.1} parent=1 // pred_fallthru
      _
    // Predicated region
    $region14: #{tpu_custom_call.1} parent=1 // pred_check
      _
    $region15: #{tpu_custom_call.1} parent=1 // pred_check_branch
      %44 = sbr.rel (0) target = $region17
    $region16: #{tpu_custom_call.1} parent=1 // pred_region
      %46 = vsyncadd [#allocation10], 0
      %s48 = sshll.u32 %s3, 4
      %s49 = int_to_ptr.hbm [resolvable:$true] %s48
      %s50 = sshll.u32 [#allocation9], 4
      %s51 = int_to_ptr.vmem [resolvable:$true] %s50
      %53 = dma.hbm_to_vmem [thread:$0]  %s49, 128, %s51, [#allocation10]
    $region17: #{tpu_custom_call.1} parent=1 // pred_fallthru
      _
    // Predicated region
    $region18: #{tpu_custom_call.1} parent=1 // pred_check
      _
    $region19: #{tpu_custom_call.1} parent=1 // pred_check_branch
      %55 = sbr.rel (0) target = $region21
    $region20: #{tpu_custom_call.1} parent=1 // pred_region
      %57 = dma.done [#allocation5], 16
    $region21: #{tpu_custom_call.1} parent=1 // pred_fallthru
      _
    // Predicated region
    $region22: #{tpu_custom_call.1} parent=1 // pred_check
      _
    $region23: #{tpu_custom_call.1} parent=1 // pred_check_branch
      %59 = sbr.rel (0) target = $region25
    $region24: #{tpu_custom_call.1} parent=1 // pred_region
      %61 = dma.done [#allocation7], 16
    $region25: #{tpu_custom_call.1} parent=1 // pred_fallthru
      _
    // Predicated region
    $region26: #{tpu_custom_call.1} parent=1 // pred_check
      _
    $region27: #{tpu_custom_call.1} parent=1 // pred_check_branch
      %63 = sbr.rel (0) target = $region29
    $region28: #{tpu_custom_call.1} parent=1 // pred_region
      %65 = dma.done [#allocation3], 128
    $region29: #{tpu_custom_call.1} parent=1 // pred_fallthru
      _
    // Predicated region
    $region30: #{tpu_custom_call.1} parent=1 // pred_check
      _
    $region31: #{tpu_custom_call.1} parent=1 // pred_check_branch
      %67 = sbr.rel (0) target = $region33
    $region32: #{tpu_custom_call.1} parent=1 // pred_region
      %69 = dma.done [#allocation10], 128
    $region33: #{tpu_custom_call.1} parent=1 // pred_fallthru
      _
    %70 = sfence
    %v71 = vld [vmem:[#allocation8] sm:$0xff]
    loop: start=0, step=1, limit=16
    $region34: #{tpu_custom_call.1} parent=1 // loop_pre_header
      _
    $region35: #{tpu_custom_call.1} parent=1 // loop_header
      %s73 = sphi 0, %s77
      %p74 = scmp.ge.s32.totalorder %s73, 16
      %v78 = vphi 0.0, %v148
      %v79 = vphi 0.0, %v151
    $region36: #{tpu_custom_call.1} parent=1 // loop_header_branch
      %76 = sbr.rel (%p74) target = $region40
    $region37: #{tpu_custom_call.1} parent=1 // loop_body
      %s80 = smul.u32 %s73, 8
      %v81 = vstv %s80
      %vm82 = vcmp.eq.s32.totalorder %v71, %v81
      %s83 = sld [smem:[#allocation2 + %s80]]
      %v84 = vstv %s83
      %v85 = vsel %vm82, %v84, %v78
      %s86 = sld [smem:[#allocation6 + %s80]]
      %v87 = vstv %s86
      %v88 = vsel %vm82, %v87, %v79
      %s89 = sadd.s32 %s80, 1
      %v90 = vstv %s89
      %vm91 = vcmp.eq.s32.totalorder %v71, %v90
      %s92 = sld [smem:[#allocation2 + %s89]]
      %v93 = vstv %s92
      %v94 = vsel %vm91, %v93, %v85
      %s95 = sld [smem:[#allocation6 + %s89]]
      %v96 = vstv %s95
      %v97 = vsel %vm91, %v96, %v88
      %s98 = sadd.s32 %s80, 2
      %v99 = vstv %s98
      %vm100 = vcmp.eq.s32.totalorder %v71, %v99
      %s101 = sld [smem:[#allocation2 + %s98]]
      %v102 = vstv %s101
      %v103 = vsel %vm100, %v102, %v94
      %s104 = sld [smem:[#allocation6 + %s98]]
      %v105 = vstv %s104
      %v106 = vsel %vm100, %v105, %v97
      %s107 = sadd.s32 %s80, 3
      %v108 = vstv %s107
      %vm109 = vcmp.eq.s32.totalorder %v71, %v108
      %s110 = sld [smem:[#allocation2 + %s107]]
      %v111 = vstv %s110
      %v112 = vsel %vm109, %v111, %v103
      %s113 = sld [smem:[#allocation6 + %s107]]
      %v114 = vstv %s113
      %v115 = vsel %vm109, %v114, %v106
      %s116 = sadd.s32 %s80, 4
      %v117 = vstv %s116
      %vm118 = vcmp.eq.s32.totalorder %v71, %v117
      %s119 = sld [smem:[#allocation2 + %s116]]
      %v120 = vstv %s119
      %v121 = vsel %vm118, %v120, %v112
      %s122 = sld [smem:[#allocation6 + %s116]]
      %v123 = vstv %s122
      %v124 = vsel %vm118, %v123, %v115
      %s125 = sadd.s32 %s80, 5
      %v126 = vstv %s125
      %vm127 = vcmp.eq.s32.totalorder %v71, %v126
      %s128 = sld [smem:[#allocation2 + %s125]]
      %v129 = vstv %s128
      %v130 = vsel %vm127, %v129, %v121
      %s131 = sld [smem:[#allocation6 + %s125]]
      %v132 = vstv %s131
      %v133 = vsel %vm127, %v132, %v124
      %s134 = sadd.s32 %s80, 6
      %v135 = vstv %s134
      %vm136 = vcmp.eq.s32.totalorder %v71, %v135
      %s137 = sld [smem:[#allocation2 + %s134]]
      %v138 = vstv %s137
      %v139 = vsel %vm136, %v138, %v130
      %s140 = sld [smem:[#allocation6 + %s134]]
      %v141 = vstv %s140
      %v142 = vsel %vm136, %v141, %v133
      %s143 = sadd.s32 %s80, 7
      %v144 = vstv %s143
      %vm145 = vcmp.eq.s32.totalorder %v71, %v144
      %s146 = sld [smem:[#allocation2 + %s143]]
      %v147 = vstv %s146
      %v148 = vsel %vm145, %v147, %v139
      %s149 = sld [smem:[#allocation6 + %s143]]
      %v150 = vstv %s149
      %v151 = vsel %vm145, %v150, %v142
    $region38: #{tpu_custom_call.1} parent=1 // loop_footer
      %s77 = sadd.s32 1, %s73
    $region39: #{tpu_custom_call.1} parent=1 // loop_footer_branch
      %72 = sbr.rel target = $region35
    $region40: #{tpu_custom_call.1} parent=1 // loop_exit
      _
    %v152 = vld [vmem:[#allocation9] sm:$0xff]
    %v153 = vmul.f32 %v152, %v78
    %v154 = vadd.f32 %v153, %v79
    %155 = vst [vmem:[#allocation11] sm:$0xff] %v154
    // Predicated region
    $region41: #{tpu_custom_call.1} parent=1 // pred_check
      _
    $region42: #{tpu_custom_call.1} parent=1 // pred_check_branch
      %157 = sbr.rel (0) target = $region44
    $region43: #{tpu_custom_call.1} parent=1 // pred_region
      %159 = vsyncadd [#allocation4], 0
      %s161 = sshll.u32 [#allocation11], 4
      %s162 = int_to_ptr.vmem [resolvable:$true] %s161
      %s163 = sshll.u32 %s4, 4
      %s164 = int_to_ptr.hbm [resolvable:$true] %s163
      %166 = dma.vmem_to_hbm [thread:$0]  %s162, 128, %s164, [#allocation4]
    $region44: #{tpu_custom_call.1} parent=1 // pred_fallthru
      _
    // Predicated region
    $region45: #{tpu_custom_call.1} parent=1 // pred_check
      _
    $region46: #{tpu_custom_call.1} parent=1 // pred_check_branch
      %168 = sbr.rel (0) target = $region48
    $region47: #{tpu_custom_call.1} parent=1 // pred_region
      %170 = dma.done [#allocation4], 128
    $region48: #{tpu_custom_call.1} parent=1 // pred_fallthru
      _
    %171 = vsyncpa [#allocation3], 1
    %172 = vsyncpa [#allocation10], 1
    %173 = vsyncpa [#allocation4], 1
    %174 = vsyncpa [#allocation5], 1
    %175 = vsyncpa [#allocation7], 1

</llo_original>
